<compile_context>
chip_gen: v7x
topology: tpu7x:2x2x1
jax: 0.10.0
libtpu: 0.0.40
codegen_flags: <defaults>
</compile_context>

<pallas_src>
import jax
import jax.numpy as jnp
from jax.experimental import pallas as pl
from jax.experimental.pallas import tpu as pltpu


def _round_up(x, m):
    return ((x + m - 1) // m) * m


def _fused_kernel(x_ref, cov_ref, scal_ref, out_ref, acc_ref):
    # grid = (batch tiles ["parallel"], reduction chunks ["arbitrary", last])
    k = pl.program_id(1)

    @pl.when(k == 0)
    def _():
        acc_ref[...] = jnp.zeros_like(acc_ref)

    # (tb, tk) * (1, tk) broadcast on the VPU, cross-lane reduce on the XLU.
    acc_ref[...] += jnp.sum(x_ref[...] * cov_ref[...], axis=-1, keepdims=True)

    @pl.when(k == pl.num_programs(1) - 1)
    def _():
        conv_b = scal_ref[0]
        fc_w = scal_ref[1]
        fc_b = scal_ref[2]
        pooled = acc_ref[...] + conv_b          # bias folds through the mean
        y = pooled * fc_w + fc_b                # fc(1 -> 1)
        # numerically stable sigmoid
        e = jnp.exp(-jnp.abs(y))
        out_ref[...] = jnp.where(y >= 0, 1.0 / (1.0 + e), e / (1.0 + e))


def complexity_estimator(x, conv_w, conv_b, fc_w, fc_b, *, max_tb=128, max_tk=8192):
    """x: (B, C, H, W) float32.  Returns (B, 1) float32 sigmoid outputs."""
    B, C, H, W = x.shape
    N = C * H * W

    # ---- fold conv3x3(pad=1) + global average pool into one weighted reduction
    w = conv_w.reshape(C, 3, 3).astype(jnp.float32)
    i_idx = jnp.arange(H)[:, None]
    u = jnp.arange(3)[None, :]
    rmask = ((i_idx - u + 1 >= 0) & (i_idx - u + 1 <= H - 1)).astype(jnp.float32)  # (H,3)
    j_idx = jnp.arange(W)[:, None]
    v = jnp.arange(3)[None, :]
    cmask = ((j_idx - v + 1 >= 0) & (j_idx - v + 1 <= W - 1)).astype(jnp.float32)  # (W,3)
    coverage = jnp.einsum("cuv,iu,jv->cij", w, rmask, cmask)                        # (C,H,W)
    cov = (coverage / float(H * W)).reshape(-1).astype(jnp.float32)                 # (N,)

    # lane-dense layout: reduction axis (C*H*W) sits in the 128-lane minor dim
    x_flat = x.astype(jnp.float32).reshape(B, N)

    # ---- tile sizes (modest blocks: fit v7x's smaller VMEM, keep pipelining) ----
    if N <= max_tk:
        tk = _round_up(N, 128)
        Np = tk
    else:
        tk = max_tk
        Np = _round_up(N, tk)

    if B <= max_tb:
        tb, Bp = B, B
    else:
        tb = max_tb
        Bp = _round_up(B, tb)

    if Np != N or Bp != B:
        x_flat = jnp.pad(x_flat, ((0, Bp - B), (0, Np - N)))
    if Np != N:
        cov = jnp.pad(cov, (0, Np - N))
    cov2 = cov.reshape(1, Np)

    scalars = jnp.concatenate(
        [conv_b.reshape(-1), fc_w.reshape(-1), fc_b.reshape(-1)]
    ).astype(jnp.float32)                                                            # (3,)

    grid = (Bp // tb, Np // tk)

    out = pl.pallas_call(
        _fused_kernel,
        out_shape=jax.ShapeDtypeStruct((Bp, 1), jnp.float32),
        grid_spec=pltpu.PrefetchScalarGridSpec(
            num_scalar_prefetch=0,
            grid=grid,
            in_specs=[
                pl.BlockSpec((tb, tk), lambda b, k: (b, k)),                 # x tiles
                pl.BlockSpec((1, tk), lambda b, k: (0, k)),                  # coverage
                pl.BlockSpec(memory_space=pltpu.MemorySpace.SMEM),           # scalars
            ],
            out_specs=pl.BlockSpec((tb, 1), lambda b, k: (b, 0)),
            scratch_shapes=[pltpu.VMEM((tb, 1), jnp.float32)],
        ),
        compiler_params=pltpu.CompilerParams(
            dimension_semantics=("parallel", "arbitrary"),
            vmem_limit_bytes=32 * 1024 * 1024,
        ),
    )(x_flat, cov2, scalars)

    return out[:B]


def reference(x, conv_w, conv_b, fc_w, fc_b):
    """Pure-JAX reference matching the PyTorch forward pass."""
    out = jax.lax.conv_general_dilated(
        x, conv_w, window_strides=(1, 1), padding="SAME",
        dimension_numbers=("NCHW", "OIHW", "NCHW"))
    out = out + conv_b.reshape(1, -1, 1, 1)
    pooled = jnp.mean(out, axis=(2, 3))            # (B, 1)
    y = pooled @ fc_w.T + fc_b                     # (B, 1)
    return jax.nn.sigmoid(y)


if __name__ == "__main__":
    B, C, H, W = 2, 4, 16, 16

    key = jax.random.PRNGKey(0)
    kx, kw, kb, kfw, kfb = jax.random.split(key, 5)

    fan_in_conv = C * 3 * 3
    bound_c = 1.0 / (fan_in_conv ** 0.5)
    conv_w = jax.random.uniform(kw, (1, C, 3, 3), jnp.float32, -bound_c, bound_c)
    conv_b = jax.random.uniform(kb, (1,), jnp.float32, -bound_c, bound_c)
    fc_w = jax.random.uniform(kfw, (1, 1), jnp.float32, -1.0, 1.0)
    fc_b = jax.random.uniform(kfb, (1,), jnp.float32, -1.0, 1.0)

    x = jax.random.normal(kx, (B, C, H, W), jnp.float32)

    out = complexity_estimator(x, conv_w, conv_b, fc_w, fc_b)
    out = jax.block_until_ready(out)

    ref = reference(x, conv_w, conv_b, fc_w, fc_b)
    assert out.shape == (B, 1)
    assert jnp.allclose(out, ref, atol=1e-5, rtol=1e-5), (out, ref)

    print("KERNEL_OK")
</pallas_src>

<mosaic_0001>
module attributes {stable_mosaic.version = 11 : i64} {
  func.func @_fused_kernel(%arg0: i32, %arg1: i32, %arg2: memref<2x1024xf32, #tpu.memory_space<vmem>>, %arg3: memref<1x1024xf32, #tpu.memory_space<vmem>>, %arg4: memref<3xf32, #tpu.memory_space<smem>>, %arg5: memref<2x1xf32, #tpu.memory_space<vmem>>, %arg6: memref<2x1xf32, #tpu.memory_space<vmem>>) attributes {dimension_semantics = [#tpu.dimension_semantics<parallel>, #tpu.dimension_semantics<arbitrary>], iteration_bounds = array<i64: 1, 1>, scalar_prefetch = 0 : i64, scratch_operands = 1 : i64, tpu.core_type = #tpu.core_type<tc>, window_params = [{transform_indices = @transform_0, window_bounds = array<i64: 2, 1024>}, {transform_indices = @transform_1, window_bounds = array<i64: 1, 1024>}, {transform_indices = @transform_2, window_bounds = array<i64: 3>}, {transform_indices = @transform_3, window_bounds = array<i64: 2, 1>}]} {
    %c0_i32 = arith.constant 0 : i32
    %0 = arith.cmpi eq, %arg1, %c0_i32 : i32
    %1 = arith.extui %0 : i1 to i32
    %c0_i32_0 = arith.constant 0 : i32
    %2 = arith.cmpi ne, %1, %c0_i32_0 : i32
    scf.if %2 {
      %cst_10 = arith.constant 0.000000e+00 : f32
      %15 = vector.broadcast %cst_10 : f32 to vector<2x1xf32>
      %c0_11 = arith.constant 0 : index
      %c0_12 = arith.constant 0 : index
      %16 = vector.load %arg6[%c0_11, %c0_12] : memref<2x1xf32, #tpu.memory_space<vmem>>, vector<2x1xf32>
      tpu.vector_store %arg6[%c0_11, %c0_12], %15 {strides = array<i32>} : memref<2x1xf32, #tpu.memory_space<vmem>>, vector<2x1xf32>,
    } else {
    }
    %c0 = arith.constant 0 : index
    %c0_1 = arith.constant 0 : index
    %3 = vector.load %arg6[%c0, %c0_1] : memref<2x1xf32, #tpu.memory_space<vmem>>, vector<2x1xf32>
    %c0_2 = arith.constant 0 : index
    %c0_3 = arith.constant 0 : index
    %4 = vector.load %arg2[%c0_2, %c0_3] : memref<2x1024xf32, #tpu.memory_space<vmem>>, vector<2x1024xf32>
    %c0_4 = arith.constant 0 : index
    %c0_5 = arith.constant 0 : index
    %5 = vector.load %arg3[%c0_4, %c0_5] : memref<1x1024xf32, #tpu.memory_space<vmem>>, vector<1x1024xf32>
    %6 = vector.broadcast %5 : vector<1x1024xf32> to vector<2x1024xf32>
    %7 = arith.mulf %4, %6 : vector<2x1024xf32>
    %cst = arith.constant dense<0.000000e+00> : vector<2xf32>
    %8 = vector.multi_reduction <add>, %7, %cst [1] : vector<2x1024xf32> to vector<2xf32>
    %9 = vector.shape_cast %8 : vector<2xf32> to vector<2x1xf32>
    %10 = arith.addf %3, %9 : vector<2x1xf32>
    %c0_6 = arith.constant 0 : index
    %c0_7 = arith.constant 0 : index
    %11 = vector.load %arg6[%c0_6, %c0_7] : memref<2x1xf32, #tpu.memory_space<vmem>>, vector<2x1xf32>
    tpu.vector_store %arg6[%c0_6, %c0_7], %10 {strides = array<i32>} : memref<2x1xf32, #tpu.memory_space<vmem>>, vector<2x1xf32>,
    %c0_i32_8 = arith.constant 0 : i32
    %12 = arith.cmpi eq, %arg1, %c0_i32_8 : i32
    %13 = arith.extui %12 : i1 to i32
    %c0_i32_9 = arith.constant 0 : i32
    %14 = arith.cmpi ne, %13, %c0_i32_9 : i32
    scf.if %14 {
      %c0_10 = arith.constant 0 : index
      %15 = memref.load %arg4[%c0_10] : memref<3xf32, #tpu.memory_space<smem>>
      %c1 = arith.constant 1 : index
      %16 = memref.load %arg4[%c1] : memref<3xf32, #tpu.memory_space<smem>>
      %c2 = arith.constant 2 : index
      %17 = memref.load %arg4[%c2] : memref<3xf32, #tpu.memory_space<smem>>
      %c0_11 = arith.constant 0 : index
      %c0_12 = arith.constant 0 : index
      %18 = vector.load %arg6[%c0_11, %c0_12] : memref<2x1xf32, #tpu.memory_space<vmem>>, vector<2x1xf32>
      %19 = vector.broadcast %15 : f32 to vector<2x1xf32>
      %20 = arith.addf %18, %19 : vector<2x1xf32>
      %21 = vector.broadcast %16 : f32 to vector<2x1xf32>
      %22 = arith.mulf %20, %21 : vector<2x1xf32>
      %23 = vector.broadcast %17 : f32 to vector<2x1xf32>
      %24 = arith.addf %22, %23 : vector<2x1xf32>
      %25 = math.absf %24 : vector<2x1xf32>
      %cst_13 = arith.constant 0.000000e+00 : f32
      %26 = vector.broadcast %cst_13 : f32 to vector<2x1xf32>
      %27 = arith.subf %26, %25 : vector<2x1xf32>
      %28 = math.exp %27 : vector<2x1xf32>
      %cst_14 = arith.constant 0.000000e+00 : f32
      %29 = vector.broadcast %cst_14 : f32 to vector<2x1xf32>
      %30 = arith.cmpf oge, %24, %29 : vector<2x1xf32>
      %cst_15 = arith.constant 1.000000e+00 : f32
      %31 = vector.broadcast %cst_15 : f32 to vector<2x1xf32>
      %32 = arith.addf %31, %28 : vector<2x1xf32>
      %cst_16 = arith.constant 1.000000e+00 : f32
      %33 = vector.broadcast %cst_16 : f32 to vector<2x1xf32>
      %34 = arith.divf %33, %32 : vector<2x1xf32>
      %cst_17 = arith.constant 1.000000e+00 : f32
      %35 = vector.broadcast %cst_17 : f32 to vector<2x1xf32>
      %36 = arith.addf %35, %28 : vector<2x1xf32>
      %37 = arith.divf %28, %36 : vector<2x1xf32>
      %38 = arith.select %30, %34, %37 : vector<2x1xi1>, vector<2x1xf32>
      %c0_18 = arith.constant 0 : index
      %c0_19 = arith.constant 0 : index
      %39 = vector.load %arg5[%c0_18, %c0_19] : memref<2x1xf32, #tpu.memory_space<vmem>>, vector<2x1xf32>
      tpu.vector_store %arg5[%c0_18, %c0_19], %38 {strides = array<i32>} : memref<2x1xf32, #tpu.memory_space<vmem>>, vector<2x1xf32>,
    } else {
    }
    return
  }
  func.func @transform_0(%arg0: i32, %arg1: i32) -> (i32, i32) {
    %c0_i32 = arith.constant 0 : i32
    return %arg0, %arg1 : i32, i32
  }
  func.func @transform_1(%arg0: i32, %arg1: i32) -> (i32, i32) {
    %c0_i32 = arith.constant 0 : i32
    %c0_i32_0 = arith.constant 0 : i32
    return %c0_i32, %arg1 : i32, i32
  }
  func.func @transform_2(%arg0: i32, %arg1: i32) -> i32 {
    %c0_i32 = arith.constant 0 : i32
    %c0_i32_0 = arith.constant 0 : i32
    return %c0_i32 : i32
  }
  func.func @transform_3(%arg0: i32, %arg1: i32) -> (i32, i32) {
    %c0_i32 = arith.constant 0 : i32
    %c0_i32_0 = arith.constant 0 : i32
    return %arg0, %c0_i32 : i32, i32
  }
}

</mosaic_0001>

<llo_original>
// kernel: tpu_custom_call.1
$region0: #{tpu_custom_call.1}
  #allocation0 [shape = 'u32[]', space=smem, size = 0x4, offset = 0x4, fixed_abs, tag = 'smem constant byte address 0x4 - core index']
  #allocation1 [shape = 'u32[144,128]{1,0:T(1,128)}', space=vmem, size = 0x12000, scoped, tag = 'internal scratch']
  #allocation2 [shape = 'f32[2,1]{1,0:T(2,128)}', space=vmem, size = 0x400, scoped, tag = 'scratch operand']
  %s0 = inlined_call_operand.hbm [shape: f32[2,1024], index: 0, kind: input, shape index: {}]
  %s1 = inlined_call_operand.hbm [shape: f32[1,1024], index: 1, kind: input, shape index: {}]
  %s2 = inlined_call_operand.vmem [shape: f32[3], index: 2, kind: input, shape index: {}]
  %s3 = inlined_call_operand.vmem [shape: f32[2,1], index: 3, kind: output, shape index: {}]
  %s4 = sld [smem:[#allocation0]]
  $region42: #{tpu_custom_call.1} parent=0
    _
  %s6 = ssub.s32 1, %s4
  %s7 = scalar_select 0, %s6, %s4
  $region1: #{tpu_custom_call.1} parent=0
    #allocation3 [shape = 'u8[8192]{0}', space=vmem, size = 0x2000, scoped, tag = 'input window, operand 0, single buffered']
    #allocation4 [shape = 's32[1]{0}', space=sflag, size = 0x4, scoped, tag = 'scoped memory for tpu_custom_call.1']
    #allocation5 [shape = 's32[1]{0}', space=sflag, size = 0x4, scoped, tag = 'scoped memory for tpu_custom_call.1']
    #allocation6 [shape = 'u8[4096]{0}', space=vmem, size = 0x1000, scoped, tag = 'input window, operand 1, single buffered']
    #allocation7 [shape = 's32[1]{0}', space=sflag, size = 0x4, scoped, tag = 'scoped memory for tpu_custom_call.1']
    #allocation8 [shape = 'u8[512]{0}', space=smem, size = 0x200, scoped, tag = 'input window, operand 2, single buffered']
    %8 = vsyncpa [#allocation4], 0
    %9 = vsyncpa [#allocation7], 0
    %10 = vsyncpa [#allocation5], 0
    // Predicated region
    $region2: #{tpu_custom_call.1} parent=1 // pred_check
      _
    $region3: #{tpu_custom_call.1} parent=1 // pred_check_branch
      %12 = sbr.rel (0) target = $region5
    $region4: #{tpu_custom_call.1} parent=1 // pred_region
      %s14 = ssub.s32 256, 256
      %15 = vsyncadd [#allocation4], %s14
      %s17 = sshll.u32 [#allocation3], 4
      %s18 = int_to_ptr.vmem [resolvable:$true] %s17
      %20 = dma.hbm_to_vmem [thread:$0]  %s0, 256, %s18, [#allocation4]
    $region5: #{tpu_custom_call.1} parent=1 // pred_fallthru
      _
    // Predicated region
    $region6: #{tpu_custom_call.1} parent=1 // pred_check
      _
    $region7: #{tpu_custom_call.1} parent=1 // pred_check_branch
      %22 = sbr.rel (0) target = $region9
    $region8: #{tpu_custom_call.1} parent=1 // pred_region
      %s24 = ssub.s32 128, 128
      %25 = vsyncadd [#allocation7], %s24
      %s27 = sshll.u32 [#allocation6], 4
      %s28 = int_to_ptr.vmem [resolvable:$true] %s27
      %30 = dma.hbm_to_vmem [thread:$0]  %s1, 128, %s28, [#allocation7]
    $region9: #{tpu_custom_call.1} parent=1 // pred_fallthru
      _
    // Predicated region
    $region10: #{tpu_custom_call.1} parent=1 // pred_check
      _
    $region11: #{tpu_custom_call.1} parent=1 // pred_check_branch
      %32 = sbr.rel (0) target = $region13
    $region12: #{tpu_custom_call.1} parent=1 // pred_region
      %s34 = ssub.s32 16, 16
      %35 = vsyncadd [#allocation5], %s34
      %s37 = sshll.u32 %s2, 4
      %s38 = int_to_ptr.vmem [resolvable:$true] %s37
      %40 = dma.vmem_to_smem %s38, 16, [#allocation8], [#allocation5]
    $region13: #{tpu_custom_call.1} parent=1 // pred_fallthru
      _
    // Predicated region
    $region14: #{tpu_custom_call.1} parent=1 // pred_check
      _
    $region15: #{tpu_custom_call.1} parent=1 // pred_check_branch
      %42 = sbr.rel (0) target = $region17
    $region16: #{tpu_custom_call.1} parent=1 // pred_region
      %43 = dma.done [#allocation4], 256
    $region17: #{tpu_custom_call.1} parent=1 // pred_fallthru
      _
    // Predicated region
    $region18: #{tpu_custom_call.1} parent=1 // pred_check
      _
    $region19: #{tpu_custom_call.1} parent=1 // pred_check_branch
      %45 = sbr.rel (0) target = $region21
    $region20: #{tpu_custom_call.1} parent=1 // pred_region
      %46 = dma.done [#allocation7], 128
    $region21: #{tpu_custom_call.1} parent=1 // pred_fallthru
      _
    // Predicated region
    $region22: #{tpu_custom_call.1} parent=1 // pred_check
      _
    $region23: #{tpu_custom_call.1} parent=1 // pred_check_branch
      %48 = sbr.rel (0) target = $region25
    $region24: #{tpu_custom_call.1} parent=1 // pred_region
      %49 = dma.done [#allocation5], 16
    $region25: #{tpu_custom_call.1} parent=1 // pred_fallthru
      _
    %50 = sfence
    %p51 = scmp.eq.s32.totalorder 0, 0
    // Predicated region
    $region26: #{tpu_custom_call.1} parent=1 // pred_check
      %p52 = pneg %p51
    $region27: #{tpu_custom_call.1} parent=1 // pred_check_branch
      %54 = sbr.rel (%p52) target = $region29
    $region28: #{tpu_custom_call.1} parent=1 // pred_region
      %vm55 = vcmask 1024
      %56 = vst.msk [vmem:[#allocation2] sm:$0x3] %vm55, 0.0
    $region29: #{tpu_custom_call.1} parent=1 // pred_fallthru
      _
    %v57 = vld [vmem:[#allocation2] sm:$0x3]
    %v58 = vld [vmem:[#allocation3] sm:$0xff]
    %v59 = vld [vmem:[#allocation3 + $0x8] sm:$0xff]
    %v60 = vld [vmem:[#allocation6] sm:$0xff]
    %v62 = vlaneseq
    %v63 = vshrl.u32 %v62, 7
    %v64 = vsub.s32 0, %v63
    %v65 = vrot.slane %v60, %v64
    %v66 = vlaneseq
    %v67 = vshrl.u32 %v66, 7
    %v68 = vsub.s32 1, %v67
    %v69 = vrot.slane %v60, %v68
    %v70 = vlaneseq
    %v71 = vshrl.u32 %v70, 7
    %v72 = vsub.s32 2, %v71
    %v73 = vrot.slane %v60, %v72
    %v74 = vlaneseq
    %v75 = vshrl.u32 %v74, 7
    %v76 = vsub.s32 3, %v75
    %v77 = vrot.slane %v60, %v76
    %v78 = vlaneseq
    %v79 = vshrl.u32 %v78, 7
    %v80 = vsub.s32 4, %v79
    %v81 = vrot.slane %v60, %v80
    %v82 = vlaneseq
    %v83 = vshrl.u32 %v82, 7
    %v84 = vsub.s32 5, %v83
    %v85 = vrot.slane %v60, %v84
    %v86 = vlaneseq
    %v87 = vshrl.u32 %v86, 7
    %v88 = vsub.s32 6, %v87
    %v89 = vrot.slane %v60, %v88
    %v90 = vlaneseq
    %v91 = vshrl.u32 %v90, 7
    %v92 = vsub.s32 7, %v91
    %v93 = vrot.slane %v60, %v92
    %v94 = vcombine.low %v65, %v69
    %v95 = vcombine.low %v73, %v77
    %v97 = vunpack.c.l.s4 1983009808
    %v98 = vunpack.c.0.s8 %v97
    %v99 = vlaneseq
    %v100 = vshrl.u32 %v99, 7
    %v101 = vsub.s32 %v98, %v100
    %v102 = vrot.slane %v94, %v101
    %v104 = vunpack.c.l.s4 1983009808
    %v105 = vunpack.c.0.s8 %v104
    %v106 = vlaneseq
    %v107 = vshrl.u32 %v106, 7
    %v108 = vsub.s32 %v105, %v107
    %v109 = vrot.slane %v95, %v108
    %v110 = vcombine.low %v102, %v109
    %v111 = vcombine.low %v81, %v85
    %v112 = vcombine.low %v89, %v93
    %v114 = vunpack.c.l.s4 1983009808
    %v115 = vunpack.c.0.s8 %v114
    %v116 = vlaneseq
    %v117 = vshrl.u32 %v116, 7
    %v118 = vsub.s32 %v115, %v117
    %v119 = vrot.slane %v111, %v118
    %v121 = vunpack.c.l.s4 1983009808
    %v122 = vunpack.c.0.s8 %v121
    %v123 = vlaneseq
    %v124 = vshrl.u32 %v123, 7
    %v125 = vsub.s32 %v122, %v124
    %v126 = vrot.slane %v112, %v125
    %v127 = vcombine.low %v119, %v126
    %v130 = vmul.f32 %v58, %v110
    %v131 = vmul.f32 %v59, %v127
    %v134 = vcombine.high %v130, %v130
    %v136 = vunpack.c.l.s4 1983009808
    %v137 = vunpack.c.0.s8 %v136
    %v138 = vlaneseq
    %v139 = vshrl.u32 %v138, 7
    %v140 = vsub.s32 %v137, %v139
    %v141 = vrot.slane %v130, %v140
    %v143 = vunpack.c.l.s4 1983009808
    %v144 = vunpack.c.0.s8 %v143
    %v145 = vlaneseq
    %v146 = vshrl.u32 %v145, 7
    %v147 = vsub.s32 %v144, %v146
    %v148 = vrot.slane %v134, %v147
    %v149 = vcombine.high %v141, %v141
    %v150 = vcombine.high %v148, %v148
    %v151 = vcombine.high %v131, %v131
    %v153 = vunpack.c.l.s4 1983009808
    %v154 = vunpack.c.0.s8 %v153
    %v155 = vlaneseq
    %v156 = vshrl.u32 %v155, 7
    %v157 = vsub.s32 %v154, %v156
    %v158 = vrot.slane %v131, %v157
    %v160 = vunpack.c.l.s4 1983009808
    %v161 = vunpack.c.0.s8 %v160
    %v162 = vlaneseq
    %v163 = vshrl.u32 %v162, 7
    %v164 = vsub.s32 %v161, %v163
    %v165 = vrot.slane %v151, %v164
    %v166 = vcombine.high %v158, %v158
    %v167 = vcombine.high %v165, %v165
    %vm176 = vcmask 1041408
    %v177 = vsel %vm176, %v141, 0.0
    %v178 = vsel %vm176, %v149, 0.0
    %v179 = vadd.f32 %v177, %v178
    %v180 = vsel %vm176, %v148, 0.0
    %v181 = vadd.f32 %v179, %v180
    %v182 = vsel %vm176, %v150, 0.0
    %v183 = vadd.f32 %v181, %v182
    %v184 = vsel %vm176, %v158, 0.0
    %v185 = vadd.f32 %v183, %v184
    %v186 = vsel %vm176, %v166, 0.0
    %v187 = vadd.f32 %v185, %v186
    %v188 = vsel %vm176, %v165, 0.0
    %v189 = vadd.f32 %v187, %v188
    %v190 = vsel %vm176, %v167, 0.0
    %v191 = vadd.f32 %v189, %v190
    %192 = vadd.xlane.f32.xlu0 %v191
    %v193 = vpop.xlane.xlu0 %192
    %v194 = vadd.f32 %v57, %v193
    %vm195 = vcmask 1024
    %196 = vst.msk [vmem:[#allocation2] sm:$0x3] %vm195, %v194
    // Predicated region
    $region30: #{tpu_custom_call.1} parent=1 // pred_check
      %p197 = pneg %p51
    $region31: #{tpu_custom_call.1} parent=1 // pred_check_branch
      %199 = sbr.rel (%p197) target = $region33
    $region32: #{tpu_custom_call.1} parent=1 // pred_region
      %s200 = sld [smem:[#allocation8]]
      %s201 = sld [smem:[#allocation8 + $0x1]]
      %s202 = sld [smem:[#allocation8 + $0x2]]
      %v203 = vld [vmem:[#allocation2] sm:$0x3]
      %v204 = vstv %s200
      %v205 = vadd.f32 %v203, %v204
      %v206 = vstv %s201
      %v207 = vmul.f32 %v205, %v206
      %v208 = vstv %s202
      %v209 = vadd.f32 %v207, %v208
      %v210 = vand.u32 2147483647, %v209
      %v211 = vsub.f32 0.0, %v210
      %v212 = vmul.f32 %v211, 1.442695
      %v213 = vpow.pop %v212
      %vm214 = vcmp.ge.f32.partialorder %v209, 0.0
      %v215 = vadd.f32 %v213, 1.0
      %v216 = vrcp.pop %v215
      %v217 = vmul.f32 1.0, %v216
      %v218 = vmul.f32 %v213, %v216
      %v219 = vsel %vm214, %v217, %v218
      %220 = vst.msk [vmem:[%s3] sm:$0x3] %vm195, %v219
    $region33: #{tpu_custom_call.1} parent=1 // pred_fallthru
      _
    // Predicated region
    $region34: #{tpu_custom_call.1} parent=1 // pred_check
      _
    $region35: #{tpu_custom_call.1} parent=1 // pred_check_branch
      %222 = sbr.rel (0) target = $region37
    $region36: #{tpu_custom_call.1} parent=1 // pred_region
      _
    $region37: #{tpu_custom_call.1} parent=1 // pred_fallthru
      _
    // Predicated region
    $region38: #{tpu_custom_call.1} parent=1 // pred_check
      _
    $region39: #{tpu_custom_call.1} parent=1 // pred_check_branch
      %224 = sbr.rel (0) target = $region41
    $region40: #{tpu_custom_call.1} parent=1 // pred_region
      _
    $region41: #{tpu_custom_call.1} parent=1 // pred_fallthru
      _
    %225 = vsyncpa [#allocation4], 1
    %226 = vsyncpa [#allocation7], 1
    %227 = vsyncpa [#allocation5], 1

</llo_original>
